<compile_context>
chip_gen: v7x
topology: tpu7x:2x2x1
jax: 0.10.0
libtpu: 0.0.40
codegen_flags: <defaults>
</compile_context>

<pallas_src>
import functools

import jax
import jax.numpy as jnp
from jax.experimental import pallas as pl
from jax.experimental.pallas import tpu as pltpu

_LANES = 384  # 3 * 128: lane-dense whenever the ray count is a multiple of 128.


def _cdiv(a: int, b: int) -> int:
    return -(-a // b)


def _round_up(x: int, m: int) -> int:
    return ((x + m - 1) // m) * m


def _tpu_config():
    """(target_block_rows, vmem_limit_bytes, num_tensorcores) chosen per TPU generation."""
    try:
        kind = jax.devices()[0].device_kind.lower()
    except Exception:
        kind = ""
    if "v7" in kind or "7x" in kind:
        # v7x: 64 MiB VMEM per TC, 2 TCs/chip -> moderate blocks + megacore split.
        return 2048, 48 * 1024 * 1024, 2
    if "v2" in kind or "v3" in kind:
        return 512, 8 * 1024 * 1024, 1
    if "v6" in kind or "v5e" in kind or "lite" in kind:
        # v5e / v6e: single TensorCore, 128 MiB VMEM -> big blocks, no split.
        return 4096, 64 * 1024 * 1024, 1
    if "v4" in kind or "v5" in kind:
        # v4 / v5p: dual-TC megacore, 128 MiB VMEM.
        return 4096, 64 * 1024 * 1024, 2
    return 2048, 48 * 1024 * 1024, 1  # unknown: conservative


def _masked_sse_kernel(*refs, num_preds, block_rows, rows_total, need_tail_mask):
    """Accumulate sum(w * (t - p)^2) per prediction; lane-partials emitted at the last step."""
    t_ref = refs[0]
    pred_refs = refs[1:1 + num_preds]
    w_ref = refs[1 + num_preds]
    out_ref = refs[2 + num_preds]
    acc_ref = refs[3 + num_preds]

    c = pl.program_id(0)            # megacore split (halves of the rows)
    i = pl.program_id(1)            # reduction steps within the split
    inner = pl.num_programs(1)

    @pl.when(i == 0)
    def _init():
        acc_ref[...] = jnp.zeros_like(acc_ref)

    t = t_ref[...].astype(jnp.float32)
    w = w_ref[...].astype(jnp.float32)       # narrow 0/1 int8 mask -> f32 once per block

    if need_tail_mask:
        # Rows past the true row count (partial last block) hold unspecified data.
        row0 = (c * inner + i) * block_rows
        rows_here = jax.lax.broadcasted_iota(jnp.int32, (block_rows, _LANES), 0) + row0
        in_bounds = rows_here < rows_total

    for k, p_ref in enumerate(pred_refs):
        d = t - p_ref[...].astype(jnp.float32)
        term = w * d * d
        if need_tail_mask:
            # Select (not a 0-weight multiply) so NaN/Inf garbage can never leak in.
            term = jnp.where(in_bounds, term, 0.0)
        # Rows-only reduction: 384 lane-partials stay resident; no cross-lane reduce
        # and no serial scalar RMW per step.
        acc_ref[k:k + 1, :] += jnp.sum(term, axis=0, keepdims=True)

    @pl.when(i == inner - 1)
    def _finalize():
        # Whole-tile, lane-dense store; lane reduction happens in the JAX wrapper.
        out_ref[0] = acc_ref[...]


def _masked_sse_sums_pallas(targets, preds, weights_i8, *, target_block_rows,
                            vmem_limit_bytes, num_tc):
    """sum(w * (targets - p)^2) for each p in preds in a single fused Pallas call.

    targets: (N, 3); preds: list of (N, 3); weights_i8: (N, 3) int8 in {0, 1}.
    Caller guarantees N % 128 == 0 and N/128 >= 32.  Returns float32 (len(preds),).
    """
    num_preds = len(preds)
    n_elems = int(targets.size)
    rows = n_elems // _LANES

    # ---- choose row-block layout (no jnp.pad; partial end block masked in-kernel) ----
    num_splits = 1
    inner = 1
    block_rows = 32
    if num_tc >= 2 and rows > target_block_rows:
        inner = _cdiv(rows, 2 * target_block_rows)
        block_rows = _round_up(_cdiv(rows, 2 * inner), 32)
        if (2 * inner - 1) * block_rows < rows:       # both cores start in-bounds
            num_splits = 2
    if num_splits == 1:
        # Never exceed the array's row extent; multiple of 32 keeps the int8 mask aligned.
        block_rows = min(_round_up(target_block_rows, 32), max(32, (rows // 32) * 32))
        inner = _cdiv(rows, block_rows)
    need_tail_mask = (num_splits * inner * block_rows) != rows

    def as_rows(x):
        return x.reshape(rows, _LANES)   # pure reshape of contiguous (N, 3) data: no copy

    operands = [as_rows(targets)] + [as_rows(p) for p in preds] + [as_rows(weights_i8)]

    data_spec = pl.BlockSpec((block_rows, _LANES), lambda c, i: (c * inner + i, 0))
    out_spec = pl.BlockSpec((1, num_preds, _LANES), lambda c, i: (c, 0, 0))

    bytes_accessed = sum(int(o.size) * o.dtype.itemsize for o in operands)
    bytes_accessed += num_splits * num_preds * _LANES * 4
    cost = pl.CostEstimate(flops=(5 * num_preds + 1) * n_elems, transcendentals=0,
                           bytes_accessed=bytes_accessed)

    kernel = functools.partial(_masked_sse_kernel, num_preds=num_preds,
                               block_rows=block_rows, rows_total=rows,
                               need_tail_mask=need_tail_mask)

    out = pl.pallas_call(
        kernel,
        out_shape=jax.ShapeDtypeStruct((num_splits, num_preds, _LANES), jnp.float32),
        grid_spec=pltpu.PrefetchScalarGridSpec(
            num_scalar_prefetch=0,
            grid=(num_splits, inner),
            in_specs=[data_spec] * len(operands),
            out_specs=out_spec,
            scratch_shapes=[pltpu.VMEM((num_preds, _LANES), jnp.float32)],
        ),
        compiler_params=pltpu.CompilerParams(
            dimension_semantics=("parallel", "arbitrary"),
            vmem_limit_bytes=vmem_limit_bytes,
        ),
        cost_estimate=cost,
    )(*operands)

    # (num_splits, num_preds, 384) per-core lane partials -> one scalar per prediction.
    return jnp.sum(out, axis=(0, 2))


class ColorLossUnmaskedPs:
    """JAX/Pallas port of ColorLoss_Unmasked_Ps (forward only)."""

    def __init__(self, coef=1, instance_only=False, pallas_min_elements=256 * 1024):
        self.coef = coef
        self.instance_only = instance_only   # kept for parity; unused in forward (as in torch)
        # Below this many target elements the XLA fusion beats pallas_call launch overhead.
        self.pallas_min_elements = pallas_min_elements
        self._cfg = _tpu_config()

    def __call__(self, inputs: dict, batch: dict) -> jax.Array:
        targets = batch["rgbs_ps"].reshape(-1, 3)
        # NOTE: like the reference, assumes valid_mask has exactly one entry per ray.
        valid = batch["valid_mask"].reshape(-1)
        instance_mask = batch["instance_mask"]
        if instance_mask.ndim == 3 and instance_mask.shape[0] == 1:
            instance_mask = instance_mask[0]
        # batch['instance_mask_weight'] is fetched but unused in the reference forward.

        keep = jnp.logical_not(instance_mask[:, 0].astype(bool))        # (N,)
        w_ray = jnp.logical_and(valid.astype(bool), keep)               # (N,) 0/1

        preds = [inputs["rgb_unmasked_fine"][:, :, 0]]
        if "rgb_unmasked_coarse" in inputs:
            preds.append(inputs["rgb_unmasked_coarse"][:, :, 0])

        n_elems = int(targets.size)
        rows = n_elems // _LANES
        use_pallas = (n_elems >= self.pallas_min_elements
                      and n_elems % _LANES == 0
                      and rows >= 32)

        if use_pallas:
            # Narrow int8 0/1 mask: 3N bytes of HBM traffic instead of a 12N-byte f32 array.
            w_elem = jnp.broadcast_to(w_ray[:, None], targets.shape).astype(jnp.int8)
            tbr, vmem, ntc = self._cfg
            sums = _masked_sse_sums_pallas(targets, preds, w_elem,
                                           target_block_rows=tbr,
                                           vmem_limit_bytes=vmem, num_tc=ntc)
        else:
            wf = w_ray.astype(jnp.float32)[:, None]
            tf = targets.astype(jnp.float32)
            sums = jnp.stack(
                [jnp.sum(wf * (tf - p.astype(jnp.float32)) ** 2) for p in preds])

        # .mean() denominator: 3 channels for every valid ray (same for fine & coarse terms).
        denom = 3.0 * jnp.sum(valid.astype(jnp.float32))
        return self.coef * jnp.sum(sums) / denom


def _reference_loss(inputs, batch, coef=1.0):
    """Pure-JAX transcription of the PyTorch forward (masked mean == sum / count)."""
    valid = batch["valid_mask"].reshape(-1).astype(jnp.float32)
    t = batch["rgbs_ps"].reshape(-1, 3).astype(jnp.float32)
    im = batch["instance_mask"]
    if im.ndim == 3 and im.shape[0] == 1:
        im = im[0]
    keep = jnp.logical_not(im[:, 0].astype(bool)).astype(jnp.float32)
    denom = 3.0 * jnp.sum(valid)

    def one_term(pred):
        p = pred[:, :, 0].astype(jnp.float32)
        se = (t * keep[:, None] - p) ** 2 * keep[:, None]   # exactly the torch expression
        return jnp.sum(se * valid[:, None]) / denom         # boolean-mask mean

    loss = one_term(inputs["rgb_unmasked_fine"])
    if "rgb_unmasked_coarse" in inputs:
        loss = loss + one_term(inputs["rgb_unmasked_coarse"])
    return coef * loss


if __name__ == "__main__":
    key = jax.random.PRNGKey(0)

    def make_case(case_key, n_rays):
        k1, k2, k3, k4, k5 = jax.random.split(case_key, 5)
        inputs = {
            "rgb_unmasked_fine": jax.random.uniform(k1, (n_rays, 3, 1), dtype=jnp.float32),
            "rgb_unmasked_coarse": jax.random.uniform(k2, (n_rays, 3, 1), dtype=jnp.float32),
        }
        batch = {
            "rgbs_ps": jax.random.uniform(k3, (n_rays, 3), dtype=jnp.float32),
            "valid_mask": jax.random.bernoulli(k4, 0.8, (n_rays, 1)),
            "instance_mask": jax.random.bernoulli(k5, 0.3, (1, n_rays, 1)),
            "instance_mask_weight": jnp.ones((1, n_rays, 1), dtype=jnp.float32),
        }
        return inputs, batch

    # pallas_min_elements=0 forces the Pallas path even at these small demo sizes.
    loss_fn = ColorLossUnmaskedPs(coef=1, pallas_min_elements=0)
    k_a, k_b = jax.random.split(key)

    # Case 1: 4096 rays -> 32 rows, exact blocks (no tail masking needed).
    inputs_a, batch_a = make_case(k_a, 4096)
    loss_a = jax.block_until_ready(loss_fn(inputs_a, batch_a))
    ref_a = jax.block_until_ready(_reference_loss(inputs_a, batch_a, coef=1.0))
    assert jnp.allclose(loss_a, ref_a, rtol=2e-4, atol=1e-6), (loss_a, ref_a)

    # Case 2: 4736 rays -> 37 rows, exercises the partial last block + in-kernel
    # iota tail mask (no jnp.pad copies anywhere).
    inputs_b, batch_b = make_case(k_b, 4736)
    loss_b = jax.block_until_ready(loss_fn(inputs_b, batch_b))
    ref_b = jax.block_until_ready(_reference_loss(inputs_b, batch_b, coef=1.0))
    assert jnp.allclose(loss_b, ref_b, rtol=2e-4, atol=1e-6), (loss_b, ref_b)

    print("KERNEL_OK")
</pallas_src>

<mosaic_0001>
module attributes {stable_mosaic.version = 11 : i64} {
  func.func @_masked_sse_kernel(%arg0: i32, %arg1: i32, %arg2: memref<32x384xf32, #tpu.memory_space<vmem>>, %arg3: memref<32x384xf32, #tpu.memory_space<vmem>>, %arg4: memref<32x384xf32, #tpu.memory_space<vmem>>, %arg5: memref<32x384xi8, #tpu.memory_space<vmem>>, %arg6: memref<1x2x384xf32, #tpu.memory_space<vmem>>, %arg7: memref<2x384xf32, #tpu.memory_space<vmem>>) attributes {dimension_semantics = [#tpu.dimension_semantics<parallel>, #tpu.dimension_semantics<arbitrary>], iteration_bounds = array<i64: 1, 1>, scalar_prefetch = 0 : i64, scratch_operands = 1 : i64, tpu.core_type = #tpu.core_type<tc>, window_params = [{transform_indices = @transform_0, window_bounds = array<i64: 32, 384>}, {transform_indices = @transform_1, window_bounds = array<i64: 32, 384>}, {transform_indices = @transform_2, window_bounds = array<i64: 32, 384>}, {transform_indices = @transform_3, window_bounds = array<i64: 32, 384>}, {transform_indices = @transform_4, window_bounds = array<i64: 1, 2, 384>}]} {
    %c0_i32 = arith.constant 0 : i32
    %0 = arith.cmpi eq, %arg1, %c0_i32 : i32
    %1 = arith.extui %0 : i1 to i32
    %c0_i32_0 = arith.constant 0 : i32
    %2 = arith.cmpi ne, %1, %c0_i32_0 : i32
    scf.if %2 {
      %cst_18 = arith.constant 0.000000e+00 : f32
      %27 = vector.broadcast %cst_18 : f32 to vector<2x384xf32>
      %c0_19 = arith.constant 0 : index
      %c0_20 = arith.constant 0 : index
      %28 = vector.load %arg7[%c0_19, %c0_20] : memref<2x384xf32, #tpu.memory_space<vmem>>, vector<2x384xf32>
      tpu.vector_store %arg7[%c0_19, %c0_20], %27 {strides = array<i32>} : memref<2x384xf32, #tpu.memory_space<vmem>>, vector<2x384xf32>,
    } else {
    }
    %c0 = arith.constant 0 : index
    %c0_1 = arith.constant 0 : index
    %3 = vector.load %arg2[%c0, %c0_1] : memref<32x384xf32, #tpu.memory_space<vmem>>, vector<32x384xf32>
    %c0_2 = arith.constant 0 : index
    %c0_3 = arith.constant 0 : index
    %4 = vector.load %arg5[%c0_2, %c0_3] : memref<32x384xi8, #tpu.memory_space<vmem>>, vector<32x384xi8>
    %5 = arith.sitofp %4 : vector<32x384xi8> to vector<32x384xf32>
    %c0_4 = arith.constant 0 : index
    %c0_5 = arith.constant 0 : index
    %6 = vector.load %arg3[%c0_4, %c0_5] : memref<32x384xf32, #tpu.memory_space<vmem>>, vector<32x384xf32>
    %7 = arith.subf %3, %6 : vector<32x384xf32>
    %8 = arith.mulf %5, %7 : vector<32x384xf32>
    %9 = arith.mulf %8, %7 : vector<32x384xf32>
    %c0_6 = arith.constant 0 : index
    %c0_7 = arith.constant 0 : index
    %10 = vector.load %arg7[%c0_6, %c0_7] : memref<2x384xf32, #tpu.memory_space<vmem>>, vector<1x384xf32>
    %cst = arith.constant dense<0.000000e+00> : vector<384xf32>
    %11 = vector.multi_reduction <add>, %9, %cst [0] : vector<32x384xf32> to vector<384xf32>
    %12 = vector.shape_cast %11 : vector<384xf32> to vector<1x384xf32>
    %13 = arith.addf %10, %12 : vector<1x384xf32>
    %c0_8 = arith.constant 0 : index
    %c0_9 = arith.constant 0 : index
    %14 = vector.load %arg7[%c0_8, %c0_9] : memref<2x384xf32, #tpu.memory_space<vmem>>, vector<1x384xf32>
    tpu.vector_store %arg7[%c0_8, %c0_9], %13 {strides = array<i32>} : memref<2x384xf32, #tpu.memory_space<vmem>>, vector<1x384xf32>,
    %c0_10 = arith.constant 0 : index
    %c0_11 = arith.constant 0 : index
    %15 = vector.load %arg4[%c0_10, %c0_11] : memref<32x384xf32, #tpu.memory_space<vmem>>, vector<32x384xf32>
    %16 = arith.subf %3, %15 : vector<32x384xf32>
    %17 = arith.mulf %5, %16 : vector<32x384xf32>
    %18 = arith.mulf %17, %16 : vector<32x384xf32>
    %c1 = arith.constant 1 : index
    %c0_12 = arith.constant 0 : index
    %19 = vector.load %arg7[%c1, %c0_12] : memref<2x384xf32, #tpu.memory_space<vmem>>, vector<1x384xf32>
    %cst_13 = arith.constant dense<0.000000e+00> : vector<384xf32>
    %20 = vector.multi_reduction <add>, %18, %cst_13 [0] : vector<32x384xf32> to vector<384xf32>
    %21 = vector.shape_cast %20 : vector<384xf32> to vector<1x384xf32>
    %22 = arith.addf %19, %21 : vector<1x384xf32>
    %c1_14 = arith.constant 1 : index
    %c0_15 = arith.constant 0 : index
    %23 = vector.load %arg7[%c1_14, %c0_15] : memref<2x384xf32, #tpu.memory_space<vmem>>, vector<1x384xf32>
    tpu.vector_store %arg7[%c1_14, %c0_15], %22 {strides = array<i32>} : memref<2x384xf32, #tpu.memory_space<vmem>>, vector<1x384xf32>,
    %c0_i32_16 = arith.constant 0 : i32
    %24 = arith.cmpi eq, %arg1, %c0_i32_16 : i32
    %25 = arith.extui %24 : i1 to i32
    %c0_i32_17 = arith.constant 0 : i32
    %26 = arith.cmpi ne, %25, %c0_i32_17 : i32
    scf.if %26 {
      %c0_18 = arith.constant 0 : index
      %c0_19 = arith.constant 0 : index
      %27 = vector.load %arg7[%c0_18, %c0_19] : memref<2x384xf32, #tpu.memory_space<vmem>>, vector<2x384xf32>
      %c0_20 = arith.constant 0 : index
      %c0_21 = arith.constant 0 : index
      %c0_22 = arith.constant 0 : index
      %28 = vector.load %arg6[%c0_20, %c0_21, %c0_22] : memref<1x2x384xf32, #tpu.memory_space<vmem>>, vector<1x2x384xf32>
      %29 = vector.shape_cast %28 : vector<1x2x384xf32> to vector<2x384xf32>
      %30 = vector.shape_cast %27 : vector<2x384xf32> to vector<1x2x384xf32>
      tpu.vector_store %arg6[%c0_20, %c0_21, %c0_22], %30 {strides = array<i32>} : memref<1x2x384xf32, #tpu.memory_space<vmem>>, vector<1x2x384xf32>,
    } else {
    }
    return
  }
  func.func @transform_0(%arg0: i32, %arg1: i32) -> (i32, i32) {
    %c1_i32 = arith.constant 1 : i32
    %0 = arith.muli %arg0, %c1_i32 : i32
    %1 = arith.addi %0, %arg1 : i32
    %c0_i32 = arith.constant 0 : i32
    %c0_i32_0 = arith.constant 0 : i32
    return %1, %c0_i32 : i32, i32
  }
  func.func @transform_1(%arg0: i32, %arg1: i32) -> (i32, i32) {
    %c1_i32 = arith.constant 1 : i32
    %0 = arith.muli %arg0, %c1_i32 : i32
    %1 = arith.addi %0, %arg1 : i32
    %c0_i32 = arith.constant 0 : i32
    %c0_i32_0 = arith.constant 0 : i32
    return %1, %c0_i32 : i32, i32
  }
  func.func @transform_2(%arg0: i32, %arg1: i32) -> (i32, i32) {
    %c1_i32 = arith.constant 1 : i32
    %0 = arith.muli %arg0, %c1_i32 : i32
    %1 = arith.addi %0, %arg1 : i32
    %c0_i32 = arith.constant 0 : i32
    %c0_i32_0 = arith.constant 0 : i32
    return %1, %c0_i32 : i32, i32
  }
  func.func @transform_3(%arg0: i32, %arg1: i32) -> (i32, i32) {
    %c1_i32 = arith.constant 1 : i32
    %0 = arith.muli %arg0, %c1_i32 : i32
    %1 = arith.addi %0, %arg1 : i32
    %c0_i32 = arith.constant 0 : i32
    %c0_i32_0 = arith.constant 0 : i32
    return %1, %c0_i32 : i32, i32
  }
  func.func @transform_4(%arg0: i32, %arg1: i32) -> (i32, i32, i32) {
    %c0_i32 = arith.constant 0 : i32
    %c0_i32_0 = arith.constant 0 : i32
    %c0_i32_1 = arith.constant 0 : i32
    return %arg0, %c0_i32, %c0_i32_0 : i32, i32, i32
  }
}

</mosaic_0001>

<llo_original>
// kernel: tpu_custom_call.1
$region0: #{tpu_custom_call.1}
  #allocation0 [shape = 'u32[]', space=smem, size = 0x4, offset = 0x4, fixed_abs, tag = 'smem constant byte address 0x4 - core index']
  #allocation1 [shape = 'u32[144,128]{1,0:T(1,128)}', space=vmem, size = 0x12000, scoped, tag = 'internal scratch']
  #allocation2 [shape = 'f32[2,384]{1,0:T(2,128)}', space=vmem, size = 0xc00, scoped, tag = 'scratch operand']
  %s0 = inlined_call_operand.hbm [shape: f32[32,384], index: 0, kind: input, shape index: {}]
  %s1 = inlined_call_operand.hbm [shape: f32[32,384], index: 1, kind: input, shape index: {}]
  %s2 = inlined_call_operand.hbm [shape: f32[32,384], index: 2, kind: input, shape index: {}]
  %s3 = inlined_call_operand.hbm [shape: s8[32,384], index: 3, kind: input, shape index: {}]
  %s4 = inlined_call_operand.hbm [shape: f32[1,2,384], index: 4, kind: output, shape index: {}]
  %s5 = sld [smem:[#allocation0]]
  $region50: #{tpu_custom_call.1} parent=0
    _
  %s7 = ssub.s32 1, %s5
  %s8 = scalar_select 0, %s7, %s5
  $region1: #{tpu_custom_call.1} parent=0
    #allocation3 [shape = 'u8[49152]{0}', space=vmem, size = 0xc000, scoped, tag = 'input window, operand 0, single buffered']
    #allocation4 [shape = 's32[1]{0}', space=sflag, size = 0x4, scoped, tag = 'scoped memory for tpu_custom_call.1']
    #allocation5 [shape = 's32[1]{0}', space=sflag, size = 0x4, scoped, tag = 'scoped memory for tpu_custom_call.1']
    #allocation6 [shape = 'u8[49152]{0}', space=vmem, size = 0xc000, scoped, tag = 'input window, operand 1, single buffered']
    #allocation7 [shape = 's32[1]{0}', space=sflag, size = 0x4, scoped, tag = 'scoped memory for tpu_custom_call.1']
    #allocation8 [shape = 'u8[49152]{0}', space=vmem, size = 0xc000, scoped, tag = 'input window, operand 2, single buffered']
    #allocation9 [shape = 'u8[12288]{0}', space=vmem, size = 0x3000, scoped, tag = 'input window, operand 3, single buffered']
    #allocation10 [shape = 's32[1]{0}', space=sflag, size = 0x4, scoped, tag = 'scoped memory for tpu_custom_call.1']
    #allocation11 [shape = 'u8[3072]{0}', space=vmem, size = 0xc00, scoped, tag = 'output window, operand 0, single buffered']
    %9 = vsyncpa [#allocation4], 0
    %10 = vsyncpa [#allocation7], 0
    %11 = vsyncpa [#allocation10], 0
    %12 = vsyncpa [#allocation5], 0
    // Predicated region
    $region2: #{tpu_custom_call.1} parent=1 // pred_check
      _
    $region3: #{tpu_custom_call.1} parent=1 // pred_check_branch
      %14 = sbr.rel (0) target = $region5
    $region4: #{tpu_custom_call.1} parent=1 // pred_region
      %s15 = sadd.s32 0, 0
      %s16 = smul.u32 4, %s15
      %s18 = ssub.s32 1536, 1536
      %19 = vsyncadd [#allocation4], %s18
      %s20 = smul.addr %s16, 3
      %s21 = smul.addr %s20, 128
      %s22 = scalar_lea.hbm %s0, %s21
      %s23 = sshll.u32 [#allocation3], 4
      %s24 = int_to_ptr.vmem [resolvable:$true] %s23
      %29 = dma.hbm_to_vmem [thread:$0]  %s22, 1536, %s24, [#allocation4], 384, 384, 24
    $region5: #{tpu_custom_call.1} parent=1 // pred_fallthru
      _
    // Predicated region
    $region6: #{tpu_custom_call.1} parent=1 // pred_check
      _
    $region7: #{tpu_custom_call.1} parent=1 // pred_check_branch
      %31 = sbr.rel (0) target = $region9
    $region8: #{tpu_custom_call.1} parent=1 // pred_region
      %s32 = sadd.s32 0, 0
      %s33 = smul.u32 4, %s32
      %s35 = ssub.s32 1536, 1536
      %36 = vsyncadd [#allocation7], %s35
      %s37 = smul.addr %s33, 3
      %s38 = smul.addr %s37, 128
      %s39 = scalar_lea.hbm %s1, %s38
      %s40 = sshll.u32 [#allocation6], 4
      %s41 = int_to_ptr.vmem [resolvable:$true] %s40
      %46 = dma.hbm_to_vmem [thread:$0]  %s39, 1536, %s41, [#allocation7], 384, 384, 24
    $region9: #{tpu_custom_call.1} parent=1 // pred_fallthru
      _
    // Predicated region
    $region10: #{tpu_custom_call.1} parent=1 // pred_check
      _
    $region11: #{tpu_custom_call.1} parent=1 // pred_check_branch
      %48 = sbr.rel (0) target = $region13
    $region12: #{tpu_custom_call.1} parent=1 // pred_region
      %s49 = sadd.s32 0, 0
      %s50 = smul.u32 4, %s49
      %s52 = ssub.s32 1536, 1536
      %53 = vsyncadd [#allocation7], %s52
      %s54 = smul.addr %s50, 3
      %s55 = smul.addr %s54, 128
      %s56 = scalar_lea.hbm %s2, %s55
      %s57 = sshll.u32 [#allocation8], 4
      %s58 = int_to_ptr.vmem [resolvable:$true] %s57
      %63 = dma.hbm_to_vmem [thread:$0]  %s56, 1536, %s58, [#allocation7], 384, 384, 24
    $region13: #{tpu_custom_call.1} parent=1 // pred_fallthru
      _
    // Predicated region
    $region14: #{tpu_custom_call.1} parent=1 // pred_check
      _
    $region15: #{tpu_custom_call.1} parent=1 // pred_check_branch
      %65 = sbr.rel (0) target = $region17
    $region16: #{tpu_custom_call.1} parent=1 // pred_region
      %s66 = sadd.s32 0, 0
      %s68 = ssub.s32 384, 384
      %69 = vsyncadd [#allocation10], %s68
      %s70 = smul.addr %s66, 3
      %s71 = smul.addr %s70, 128
      %s72 = scalar_lea.hbm %s3, %s71
      %s74 = sshll.u32 [#allocation9], 4
      %s75 = int_to_ptr.vmem [resolvable:$true] %s74
      %77 = dma.hbm_to_vmem [thread:$0]  %s72, 384, %s75, [#allocation10]
    $region17: #{tpu_custom_call.1} parent=1 // pred_fallthru
      _
    // Predicated region
    $region18: #{tpu_custom_call.1} parent=1 // pred_check
      _
    $region19: #{tpu_custom_call.1} parent=1 // pred_check_branch
      %79 = sbr.rel (0) target = $region21
    $region20: #{tpu_custom_call.1} parent=1 // pred_region
      %80 = dma.done [#allocation4], 1536
    $region21: #{tpu_custom_call.1} parent=1 // pred_fallthru
      _
    // Predicated region
    $region22: #{tpu_custom_call.1} parent=1 // pred_check
      _
    $region23: #{tpu_custom_call.1} parent=1 // pred_check_branch
      %82 = sbr.rel (0) target = $region25
    $region24: #{tpu_custom_call.1} parent=1 // pred_region
      %83 = dma.done [#allocation7], 1536
    $region25: #{tpu_custom_call.1} parent=1 // pred_fallthru
      _
    // Predicated region
    $region26: #{tpu_custom_call.1} parent=1 // pred_check
      _
    $region27: #{tpu_custom_call.1} parent=1 // pred_check_branch
      %85 = sbr.rel (0) target = $region29
    $region28: #{tpu_custom_call.1} parent=1 // pred_region
      %86 = dma.done [#allocation7], 1536
    $region29: #{tpu_custom_call.1} parent=1 // pred_fallthru
      _
    // Predicated region
    $region30: #{tpu_custom_call.1} parent=1 // pred_check
      _
    $region31: #{tpu_custom_call.1} parent=1 // pred_check_branch
      %88 = sbr.rel (0) target = $region33
    $region32: #{tpu_custom_call.1} parent=1 // pred_region
      %89 = dma.done [#allocation10], 384
    $region33: #{tpu_custom_call.1} parent=1 // pred_fallthru
      _
    %s90 = sadd.s32 0, 0
    %s91 = smul.u32 4, %s90
    %s92 = sadd.s32 0, 0
    %s93 = smul.u32 4, %s92
    %s94 = sadd.s32 0, 0
    %s95 = smul.u32 4, %s94
    %s96 = sadd.s32 0, 0
    %p97 = scmp.eq.s32.totalorder 0, 0
    // Predicated region
    $region34: #{tpu_custom_call.1} parent=1 // pred_check
      %p98 = pneg %p97
    $region35: #{tpu_custom_call.1} parent=1 // pred_check_branch
      %100 = sbr.rel (%p98) target = $region37
    $region36: #{tpu_custom_call.1} parent=1 // pred_region
      %101 = vst [vmem:[#allocation2] sm:$0x3f] 0.0
    $region37: #{tpu_custom_call.1} parent=1 // pred_fallthru
      _
    %v102 = vld [vmem:[#allocation3] sm:$0xff]
    %v103 = vld [vmem:[#allocation3 + $0x8] sm:$0xff]
    %v104 = vld [vmem:[#allocation3 + $0x10] sm:$0xff]
    %v105 = vld [vmem:[#allocation3 + $0x18] sm:$0xff]
    %v106 = vld [vmem:[#allocation3 + $0x20] sm:$0xff]
    %v107 = vld [vmem:[#allocation3 + $0x28] sm:$0xff]
    %v108 = vld [vmem:[#allocation3 + $0x30] sm:$0xff]
    %v109 = vld [vmem:[#allocation3 + $0x38] sm:$0xff]
    %v110 = vld [vmem:[#allocation3 + $0x40] sm:$0xff]
    %v111 = vld [vmem:[#allocation3 + $0x48] sm:$0xff]
    %v112 = vld [vmem:[#allocation3 + $0x50] sm:$0xff]
    %v113 = vld [vmem:[#allocation3 + $0x58] sm:$0xff]
    %v114 = vld [vmem:[#allocation9] sm:$0xff]
    %v115 = vld [vmem:[#allocation9 + $0x8] sm:$0xff]
    %v116 = vld [vmem:[#allocation9 + $0x10] sm:$0xff]
    %v117 = vunpack.c.0.s8 %v114
    %v118 = vunpack.c.0.s8 %v115
    %v119 = vunpack.c.0.s8 %v116
    %v120 = vunpack.c.1.s8 %v114
    %v121 = vunpack.c.1.s8 %v115
    %v122 = vunpack.c.1.s8 %v116
    %v123 = vunpack.c.2.s8 %v114
    %v124 = vunpack.c.2.s8 %v115
    %v125 = vunpack.c.2.s8 %v116
    %v126 = vunpack.c.3.s8 %v114
    %v127 = vunpack.c.3.s8 %v115
    %v128 = vunpack.c.3.s8 %v116
    %v129 = vcvt.s32.f32 %v117
    %v130 = vcvt.s32.f32 %v118
    %v131 = vcvt.s32.f32 %v119
    %v132 = vcvt.s32.f32 %v120
    %v133 = vcvt.s32.f32 %v121
    %v134 = vcvt.s32.f32 %v122
    %v135 = vcvt.s32.f32 %v123
    %v136 = vcvt.s32.f32 %v124
    %v137 = vcvt.s32.f32 %v125
    %v138 = vcvt.s32.f32 %v126
    %v139 = vcvt.s32.f32 %v127
    %v140 = vcvt.s32.f32 %v128
    %v141 = vld [vmem:[#allocation6] sm:$0xff]
    %v142 = vld [vmem:[#allocation6 + $0x8] sm:$0xff]
    %v143 = vld [vmem:[#allocation6 + $0x10] sm:$0xff]
    %v144 = vld [vmem:[#allocation6 + $0x18] sm:$0xff]
    %v145 = vld [vmem:[#allocation6 + $0x20] sm:$0xff]
    %v146 = vld [vmem:[#allocation6 + $0x28] sm:$0xff]
    %v147 = vld [vmem:[#allocation6 + $0x30] sm:$0xff]
    %v148 = vld [vmem:[#allocation6 + $0x38] sm:$0xff]
    %v149 = vld [vmem:[#allocation6 + $0x40] sm:$0xff]
    %v150 = vld [vmem:[#allocation6 + $0x48] sm:$0xff]
    %v151 = vld [vmem:[#allocation6 + $0x50] sm:$0xff]
    %v152 = vld [vmem:[#allocation6 + $0x58] sm:$0xff]
    %v153 = vsub.f32 %v102, %v141
    %v154 = vsub.f32 %v103, %v142
    %v155 = vsub.f32 %v104, %v143
    %v156 = vsub.f32 %v105, %v144
    %v157 = vsub.f32 %v106, %v145
    %v158 = vsub.f32 %v107, %v146
    %v159 = vsub.f32 %v108, %v147
    %v160 = vsub.f32 %v109, %v148
    %v161 = vsub.f32 %v110, %v149
    %v162 = vsub.f32 %v111, %v150
    %v163 = vsub.f32 %v112, %v151
    %v164 = vsub.f32 %v113, %v152
    %v165 = vmul.f32 %v129, %v153
    %v166 = vmul.f32 %v130, %v154
    %v167 = vmul.f32 %v131, %v155
    %v168 = vmul.f32 %v132, %v156
    %v169 = vmul.f32 %v133, %v157
    %v170 = vmul.f32 %v134, %v158
    %v171 = vmul.f32 %v135, %v159
    %v172 = vmul.f32 %v136, %v160
    %v173 = vmul.f32 %v137, %v161
    %v174 = vmul.f32 %v138, %v162
    %v175 = vmul.f32 %v139, %v163
    %v176 = vmul.f32 %v140, %v164
    %v177 = vmul.f32 %v165, %v153
    %v178 = vmul.f32 %v166, %v154
    %v179 = vmul.f32 %v167, %v155
    %v180 = vmul.f32 %v168, %v156
    %v181 = vmul.f32 %v169, %v157
    %v182 = vmul.f32 %v170, %v158
    %v183 = vmul.f32 %v171, %v159
    %v184 = vmul.f32 %v172, %v160
    %v185 = vmul.f32 %v173, %v161
    %v186 = vmul.f32 %v174, %v162
    %v187 = vmul.f32 %v175, %v163
    %v188 = vmul.f32 %v176, %v164
    %v189 = vld [vmem:[#allocation2] ss:$2 sm:$0x7]
    %v190 = vadd.f32 %v177, %v180
    %v191 = vadd.f32 %v190, %v183
    %v192 = vadd.f32 %v191, %v186
    %v193 = vrot.slane %v192, 4
    %v194 = vadd.f32 %v192, %v193
    %v195 = vrot.slane %v194, 2
    %v196 = vadd.f32 %v194, %v195
    %v197 = vrot.slane %v196, 1
    %v198 = vadd.f32 %v196, %v197
    %v199 = vadd.f32 %v178, %v181
    %v200 = vadd.f32 %v199, %v184
    %v201 = vadd.f32 %v200, %v187
    %v202 = vrot.slane %v201, 4
    %v203 = vadd.f32 %v201, %v202
    %v204 = vrot.slane %v203, 2
    %v205 = vadd.f32 %v203, %v204
    %v206 = vrot.slane %v205, 1
    %v207 = vadd.f32 %v205, %v206
    %v208 = vadd.f32 %v179, %v182
    %v209 = vadd.f32 %v208, %v185
    %v210 = vadd.f32 %v209, %v188
    %v211 = vrot.slane %v210, 4
    %v212 = vadd.f32 %v210, %v211
    %v213 = vrot.slane %v212, 2
    %v214 = vadd.f32 %v212, %v213
    %v215 = vrot.slane %v214, 1
    %v216 = vadd.f32 %v214, %v215
    %v220 = vcombine.low %v198, %v207
    %v222 = vunpack.c.l.s4 1966171168
    %v223 = vunpack.c.0.s8 %v222
    %v224 = vlaneseq
    %v225 = vshrl.u32 %v224, 7
    %v226 = vsub.s32 %v223, %v225
    %v227 = vrot.slane %v220, %v226
    %v229 = vunpack.c.l.s4 1966171168
    %v230 = vunpack.c.0.s8 %v229
    %v231 = vlaneseq
    %v232 = vshrl.u32 %v231, 7
    %v233 = vsub.s32 %v230, %v232
    %v234 = vrot.slane %v216, %v233
    %v235 = vcombine.low %v227, %v234
    %v237 = vunpack.c.l.s4 1966171168
    %v238 = vunpack.c.0.s8 %v237
    %v239 = vlaneseq
    %v240 = vshrl.u32 %v239, 7
    %v241 = vsub.s32 %v238, %v240
    %v242 = vrot.slane %v235, %v241
    %v244 = vadd.f32 %v189, %v242
    %v245 = vlaneseq
    %vm246 = vcmp.ge.s32.totalorder %v245, 0
    %vm247 = vcmp.lt.s32.totalorder %v245, 384
    %vm248 = vmand %vm246, %vm247
    %249 = vst.msk [vmem:[#allocation2] ss:$2 sm:$0x7] %vm248, %v244
    %v250 = vld [vmem:[#allocation8] sm:$0xff]
    %v251 = vld [vmem:[#allocation8 + $0x8] sm:$0xff]
    %v252 = vld [vmem:[#allocation8 + $0x10] sm:$0xff]
    %v253 = vld [vmem:[#allocation8 + $0x18] sm:$0xff]
    %v254 = vld [vmem:[#allocation8 + $0x20] sm:$0xff]
    %v255 = vld [vmem:[#allocation8 + $0x28] sm:$0xff]
    %v256 = vld [vmem:[#allocation8 + $0x30] sm:$0xff]
    %v257 = vld [vmem:[#allocation8 + $0x38] sm:$0xff]
    %v258 = vld [vmem:[#allocation8 + $0x40] sm:$0xff]
    %v259 = vld [vmem:[#allocation8 + $0x48] sm:$0xff]
    %v260 = vld [vmem:[#allocation8 + $0x50] sm:$0xff]
    %v261 = vld [vmem:[#allocation8 + $0x58] sm:$0xff]
    %v262 = vsub.f32 %v102, %v250
    %v263 = vsub.f32 %v103, %v251
    %v264 = vsub.f32 %v104, %v252
    %v265 = vsub.f32 %v105, %v253
    %v266 = vsub.f32 %v106, %v254
    %v267 = vsub.f32 %v107, %v255
    %v268 = vsub.f32 %v108, %v256
    %v269 = vsub.f32 %v109, %v257
    %v270 = vsub.f32 %v110, %v258
    %v271 = vsub.f32 %v111, %v259
    %v272 = vsub.f32 %v112, %v260
    %v273 = vsub.f32 %v113, %v261
    %v274 = vmul.f32 %v129, %v262
    %v275 = vmul.f32 %v130, %v263
    %v276 = vmul.f32 %v131, %v264
    %v277 = vmul.f32 %v132, %v265
    %v278 = vmul.f32 %v133, %v266
    %v279 = vmul.f32 %v134, %v267
    %v280 = vmul.f32 %v135, %v268
    %v281 = vmul.f32 %v136, %v269
    %v282 = vmul.f32 %v137, %v270
    %v283 = vmul.f32 %v138, %v271
    %v284 = vmul.f32 %v139, %v272
    %v285 = vmul.f32 %v140, %v273
    %v286 = vmul.f32 %v274, %v262
    %v287 = vmul.f32 %v275, %v263
    %v288 = vmul.f32 %v276, %v264
    %v289 = vmul.f32 %v277, %v265
    %v290 = vmul.f32 %v278, %v266
    %v291 = vmul.f32 %v279, %v267
    %v292 = vmul.f32 %v280, %v268
    %v293 = vmul.f32 %v281, %v269
    %v294 = vmul.f32 %v282, %v270
    %v295 = vmul.f32 %v283, %v271
    %v296 = vmul.f32 %v284, %v272
    %v297 = vmul.f32 %v285, %v273
    %s298 = scalar_lea.vmem [#allocation2], 1
    %v299 = vld [vmem:[%s298] ss:$2 sm:$0x7]
    %v300 = vadd.f32 %v286, %v289
    %v301 = vadd.f32 %v300, %v292
    %v302 = vadd.f32 %v301, %v295
    %v303 = vrot.slane %v302, 4
    %v304 = vadd.f32 %v302, %v303
    %v305 = vrot.slane %v304, 2
    %v306 = vadd.f32 %v304, %v305
    %v307 = vrot.slane %v306, 1
    %v308 = vadd.f32 %v306, %v307
    %v309 = vadd.f32 %v287, %v290
    %v310 = vadd.f32 %v309, %v293
    %v311 = vadd.f32 %v310, %v296
    %v312 = vrot.slane %v311, 4
    %v313 = vadd.f32 %v311, %v312
    %v314 = vrot.slane %v313, 2
    %v315 = vadd.f32 %v313, %v314
    %v316 = vrot.slane %v315, 1
    %v317 = vadd.f32 %v315, %v316
    %v318 = vadd.f32 %v288, %v291
    %v319 = vadd.f32 %v318, %v294
    %v320 = vadd.f32 %v319, %v297
    %v321 = vrot.slane %v320, 4
    %v322 = vadd.f32 %v320, %v321
    %v323 = vrot.slane %v322, 2
    %v324 = vadd.f32 %v322, %v323
    %v325 = vrot.slane %v324, 1
    %v326 = vadd.f32 %v324, %v325
    %v330 = vcombine.low %v308, %v317
    %v332 = vunpack.c.l.s4 1966171168
    %v333 = vunpack.c.0.s8 %v332
    %v334 = vlaneseq
    %v335 = vshrl.u32 %v334, 7
    %v336 = vsub.s32 %v333, %v335
    %v337 = vrot.slane %v330, %v336
    %v339 = vunpack.c.l.s4 1966171168
    %v340 = vunpack.c.0.s8 %v339
    %v341 = vlaneseq
    %v342 = vshrl.u32 %v341, 7
    %v343 = vsub.s32 %v340, %v342
    %v344 = vrot.slane %v326, %v343
    %v345 = vcombine.low %v337, %v344
    %v347 = vunpack.c.l.s4 1966171168
    %v348 = vunpack.c.0.s8 %v347
    %v349 = vlaneseq
    %v350 = vshrl.u32 %v349, 7
    %v351 = vsub.s32 %v348, %v350
    %v352 = vrot.slane %v345, %v351
    %v354 = vadd.f32 %v299, %v352
    %355 = vst.msk [vmem:[%s298] ss:$2 sm:$0x7] %vm248, %v354
    // Predicated region
    $region38: #{tpu_custom_call.1} parent=1 // pred_check
      %p356 = pneg %p97
    $region39: #{tpu_custom_call.1} parent=1 // pred_check_branch
      %358 = sbr.rel (%p356) target = $region41
    $region40: #{tpu_custom_call.1} parent=1 // pred_region
      %v359 = vld [vmem:[#allocation2] sm:$0x3f]
      %360 = vst [vmem:[#allocation11] sm:$0x3f] %v359
    $region41: #{tpu_custom_call.1} parent=1 // pred_fallthru
      _
    // Predicated region
    $region42: #{tpu_custom_call.1} parent=1 // pred_check
      _
    $region43: #{tpu_custom_call.1} parent=1 // pred_check_branch
      %362 = sbr.rel (0) target = $region45
    $region44: #{tpu_custom_call.1} parent=1 // pred_region
      %s364 = ssub.s32 96, 96
      %365 = vsyncadd [#allocation5], %s364
      %s367 = sshll.u32 [#allocation11], 4
      %s368 = int_to_ptr.vmem [resolvable:$true] %s367
      %370 = dma.vmem_to_hbm [thread:$0]  %s368, 96, %s4, [#allocation5]
    $region45: #{tpu_custom_call.1} parent=1 // pred_fallthru
      _
    // Predicated region
    $region46: #{tpu_custom_call.1} parent=1 // pred_check
      _
    $region47: #{tpu_custom_call.1} parent=1 // pred_check_branch
      %372 = sbr.rel (0) target = $region49
    $region48: #{tpu_custom_call.1} parent=1 // pred_region
      %373 = dma.done [#allocation5], 96
    $region49: #{tpu_custom_call.1} parent=1 // pred_fallthru
      _
    %374 = vsyncpa [#allocation4], 1
    %375 = vsyncpa [#allocation7], 1
    %376 = vsyncpa [#allocation10], 1
    %377 = vsyncpa [#allocation5], 1

</llo_original>
